<compile_context>
chip_gen: v6e
topology: v6e:2x2x1
jax: 0.10.0
libtpu: 0.0.40
codegen_flags: <defaults>
</compile_context>

<pallas_src>
import functools
import math

import jax
import jax.numpy as jnp
from jax.experimental import pallas as pl
from jax.experimental.pallas import tpu as pltpu

EPS = 1e-07
LANES = 128


def _partial_sums_kernel(x_ref, y_ref, out_ref, *, sub_rows, n_sub):
    """Per-tile partial sums: [tp, sum(p), sum(gt), sum(bce)] as (4, 8, 128)."""

    def sub_block(s, carry):
        tp, sp, sg, sb = carry
        off = pl.multiple_of(s * sub_rows, 8)
        x = x_ref[pl.ds(off, sub_rows), :].astype(jnp.float32)
        y = y_ref[pl.ds(off, sub_rows), :].astype(jnp.float32)

        # Fused sigmoid + BCE-with-logits: one exp, one log1p, one reciprocal.
        e = jnp.exp(-jnp.abs(x))
        r = pl.reciprocal(1.0 + e)                 # exact (keeps 1e-5 accuracy)
        p = jnp.where(x >= 0.0, r, e * r)          # sigmoid(x), numerically stable
        bce = jnp.maximum(x, 0.0) - x * y + jnp.log1p(e)

        def rows8(v):  # (sub_rows, 128) -> (8, 128): pure cross-vreg VPU adds
            return v.reshape(sub_rows // 8, 8, LANES).sum(axis=0)

        return (tp + rows8(p * y), sp + rows8(p), sg + rows8(y), sb + rows8(bce))

    zero = jnp.zeros((8, LANES), jnp.float32)
    init = (zero, zero, zero, zero)
    if n_sub == 1:
        tp, sp, sg, sb = sub_block(0, init)
    else:
        tp, sp, sg, sb = jax.lax.fori_loop(0, n_sub, sub_block, init)

    out_ref[0, 0] = tp
    out_ref[0, 1] = sp
    out_ref[0, 2] = sg
    out_ref[0, 3] = sb


def _chip_defaults():
    """(max_tile_rows, vmem_limit_bytes) sized to the chip's VMEM budget."""
    try:
        kind = jax.devices()[0].device_kind.lower()
    except Exception:
        kind = ""
    if "v7" in kind or "7x" in kind:
        # v7x: 64 MiB VMEM / TensorCore -> 4 MiB/input tiles, tighter limit.
        return 8192, 48 * 1024 * 1024
    # v5e / v6e (128 MiB VMEM): 8 MiB/input tiles.
    return 16384, 64 * 1024 * 1024


def _elementwise_sums(x, y):
    """Plain-JAX partial sums [tp, sum_p, sum_gt, sum_bce] for the ragged tail."""
    x = x.astype(jnp.float32)
    y = y.astype(jnp.float32)
    p = jax.nn.sigmoid(x)
    bce = jnp.maximum(x, 0.0) - x * y + jnp.log1p(jnp.exp(-jnp.abs(x)))
    return jnp.stack([jnp.sum(p * y), jnp.sum(p), jnp.sum(y), jnp.sum(bce)])


def bce_jaccard_loss(y_pr, y_gt, eps=EPS, max_tile_rows=None, sub_rows=512,
                     vmem_limit_bytes=None):
    """y_pr: logits, y_gt: targets (same shape). Returns scalar float32 loss."""
    assert y_pr.shape == y_gt.shape
    total = int(math.prod(y_pr.shape))

    d_tile, d_vmem = _chip_defaults()
    if max_tile_rows is None:
        max_tile_rows = d_tile
    if vmem_limit_bytes is None:
        vmem_limit_bytes = d_vmem

    flat_x = y_pr.reshape(-1)
    flat_y = y_gt.reshape(-1)
    rows_full = total // LANES          # complete 128-lane rows of real data

    sums = jnp.zeros((4,), jnp.float32)
    body_elems = 0

    if rows_full >= 8:
        # --- tiling plan (all static Python ints) ---------------------------
        sub = max(8, (min(sub_rows, max_tile_rows, rows_full) // 8) * 8)
        nblocks_target = max(1, -(-rows_full // max(max_tile_rows, sub)))
        tile_rows = max(sub, (rows_full // nblocks_target // sub) * sub)
        tile_rows = min(tile_rows, (max(max_tile_rows, sub) // sub) * sub)
        nblocks = rows_full // tile_rows
        n_sub = tile_rows // sub
        body_rows = nblocks * tile_rows
        body_elems = body_rows * LANES

        # --- lane-dense 2-D view of the inputs (no copy when 128-aligned) ---
        if total % LANES == 0:
            x2d = y_pr.reshape(-1, LANES)       # free row-major reshape
            y2d = y_gt.reshape(-1, LANES)
        else:
            # TODO(synk): avoid this full pad copy (manual pl.ANY +
            # make_async_copy with a short final DMA) for non-128-aligned sizes.
            pad = (-total) % LANES
            x2d = jnp.pad(flat_x, (0, pad)).reshape(-1, LANES)
            y2d = jnp.pad(flat_y, (0, pad)).reshape(-1, LANES)

        kernel = functools.partial(_partial_sums_kernel, sub_rows=sub, n_sub=n_sub)

        partials = pl.pallas_call(
            kernel,
            out_shape=jax.ShapeDtypeStruct((nblocks, 4, 8, LANES), jnp.float32),
            grid_spec=pltpu.PrefetchScalarGridSpec(
                num_scalar_prefetch=0,
                grid=(nblocks,),
                in_specs=[
                    pl.BlockSpec((tile_rows, LANES), lambda b: (b, 0)),
                    pl.BlockSpec((tile_rows, LANES), lambda b: (b, 0)),
                ],
                out_specs=pl.BlockSpec((1, 4, 8, LANES), lambda b: (b, 0, 0, 0)),
            ),
            compiler_params=pltpu.CompilerParams(
                # TODO(synk): on v7x, verify this axis shards across both
                # TensorCores under "parallel"; switch to pltpu.CORE_PARALLEL
                # if xprof shows a single busy core.
                dimension_semantics=("parallel",),
                vmem_limit_bytes=vmem_limit_bytes,
            ),
        )(x2d, y2d)

        sums = sums + jnp.sum(partials, axis=(0, 2, 3))

    if body_elems < total:
        # Ragged tail (< one tile, plus the sub-128 remainder): cheap suffix
        # slice reduced in plain jnp — no whole-tensor padding copy.
        sums = sums + _elementwise_sums(flat_x[body_elems:], flat_y[body_elems:])

    tp, sp, sg, bce_sum = sums[0], sums[1], sums[2], sums[3]
    jaccard_loss = 1.0 - (tp + eps) / (sp + sg - tp + eps)
    bce_mean = bce_sum / jnp.float32(total)
    return jaccard_loss + bce_mean


def bce_jaccard_loss_ref(y_pr, y_gt, eps=EPS):
    x = y_pr.astype(jnp.float32)
    y = y_gt.astype(jnp.float32)
    p = jax.nn.sigmoid(x)
    tp = jnp.sum(p * y)
    union = jnp.sum(p) + jnp.sum(y) - tp + eps
    jac = (tp + eps) / union
    bce = jnp.mean(jnp.maximum(x, 0.0) - x * y + jnp.log1p(jnp.exp(-jnp.abs(x))))
    return (1.0 - jac) + bce


if __name__ == "__main__":
    key = jax.random.PRNGKey(0)
    k1, k2, k3, k4, k5, k6, k7, k8 = jax.random.split(key, 8)

    # 1) NCHW batch=2, channels=4, spatial=16x16: 128-aligned, zero-copy path.
    y_pr = jax.random.normal(k1, (2, 4, 16, 16), dtype=jnp.float32)
    y_gt = (jax.random.uniform(k2, (2, 4, 16, 16)) > 0.5).astype(jnp.float32)
    loss = jax.block_until_ready(bce_jaccard_loss(y_pr, y_gt))
    ref = jax.block_until_ready(bce_jaccard_loss_ref(y_pr, y_gt))
    assert jnp.allclose(loss, ref, rtol=1e-5, atol=1e-5), (loss, ref)

    # 2) Odd shape (not 128-aligned): kernel body + jnp ragged tail.
    y_pr2 = jax.random.normal(k3, (2, 3, 17, 19), dtype=jnp.float32)
    y_gt2 = (jax.random.uniform(k4, (2, 3, 17, 19)) > 0.5).astype(jnp.float32)
    loss2 = jax.block_until_ready(bce_jaccard_loss(y_pr2, y_gt2))
    ref2 = jax.block_until_ready(bce_jaccard_loss_ref(y_pr2, y_gt2))
    assert jnp.allclose(loss2, ref2, rtol=1e-5, atol=1e-5), (loss2, ref2)

    # 3) Small tile override -> exercises a multi-block "parallel" grid.
    y_pr3 = jax.random.normal(k5, (2, 4, 16, 32), dtype=jnp.float32)
    y_gt3 = (jax.random.uniform(k6, (2, 4, 16, 32)) > 0.5).astype(jnp.float32)
    loss3 = jax.block_until_ready(bce_jaccard_loss(y_pr3, y_gt3, max_tile_rows=8))
    ref3 = jax.block_until_ready(bce_jaccard_loss_ref(y_pr3, y_gt3))
    assert jnp.allclose(loss3, ref3, rtol=1e-5, atol=1e-5), (loss3, ref3)

    # 4) 128-aligned but not tile-aligned -> kernel body + aligned jnp tail.
    y_pr4 = jax.random.normal(k7, (2, 3, 16, 32), dtype=jnp.float32)
    y_gt4 = (jax.random.uniform(k8, (2, 3, 16, 32)) > 0.5).astype(jnp.float32)
    loss4 = jax.block_until_ready(bce_jaccard_loss(y_pr4, y_gt4, max_tile_rows=16))
    ref4 = jax.block_until_ready(bce_jaccard_loss_ref(y_pr4, y_gt4))
    assert jnp.allclose(loss4, ref4, rtol=1e-5, atol=1e-5), (loss4, ref4)

    print("KERNEL_OK")
</pallas_src>

<mosaic_0001>
module attributes {stable_mosaic.version = 11 : i64} {
  func.func @_partial_sums_kernel(%arg0: i32, %arg1: memref<16x128xf32, #tpu.memory_space<vmem>>, %arg2: memref<16x128xf32, #tpu.memory_space<vmem>>, %arg3: memref<1x4x8x128xf32, #tpu.memory_space<vmem>>) attributes {dimension_semantics = [#tpu.dimension_semantics<parallel>], iteration_bounds = array<i64: 1>, scalar_prefetch = 0 : i64, scratch_operands = 0 : i64, tpu.core_type = #tpu.core_type<tc>, window_params = [{transform_indices = @transform_0, window_bounds = array<i64: 16, 128>}, {transform_indices = @transform_1, window_bounds = array<i64: 16, 128>}, {transform_indices = @transform_2, window_bounds = array<i64: 1, 4, 8, 128>}]} {
    %cst = arith.constant 0.000000e+00 : f32
    %0 = vector.broadcast %cst : f32 to vector<8x128xf32>
    %c0_i32 = arith.constant 0 : i32
    %1 = tpu.assume_multiple %c0_i32, 8 : i32
    %2 = arith.index_cast %1 : i32 to index
    %c0 = arith.constant 0 : index
    %3 = vector.load %arg1[%2, %c0] : memref<16x128xf32, #tpu.memory_space<vmem>>, vector<16x128xf32>
    %4 = arith.index_cast %1 : i32 to index
    %c0_0 = arith.constant 0 : index
    %5 = vector.load %arg2[%4, %c0_0] : memref<16x128xf32, #tpu.memory_space<vmem>>, vector<16x128xf32>
    %6 = math.absf %3 : vector<16x128xf32>
    %cst_1 = arith.constant 0.000000e+00 : f32
    %7 = vector.broadcast %cst_1 : f32 to vector<16x128xf32>
    %8 = arith.subf %7, %6 : vector<16x128xf32>
    %9 = math.exp %8 : vector<16x128xf32>
    %cst_2 = arith.constant 1.000000e+00 : f32
    %10 = vector.broadcast %cst_2 : f32 to vector<16x128xf32>
    %11 = arith.addf %10, %9 : vector<16x128xf32>
    %12 = tpu.reciprocal %11 : vector<16x128xf32> -> vector<16x128xf32>
    %cst_3 = arith.constant 0.000000e+00 : f32
    %13 = vector.broadcast %cst_3 : f32 to vector<16x128xf32>
    %14 = arith.cmpf oge, %3, %13 : vector<16x128xf32>
    %15 = arith.mulf %9, %12 : vector<16x128xf32>
    %16 = arith.select %14, %12, %15 : vector<16x128xi1>, vector<16x128xf32>
    %cst_4 = arith.constant 0.000000e+00 : f32
    %17 = vector.broadcast %cst_4 : f32 to vector<16x128xf32>
    %18 = arith.maximumf %3, %17 : vector<16x128xf32>
    %19 = arith.mulf %3, %5 : vector<16x128xf32>
    %20 = arith.subf %18, %19 : vector<16x128xf32>
    %21 = math.log1p %9 : vector<16x128xf32>
    %22 = arith.addf %20, %21 : vector<16x128xf32>
    %23 = arith.mulf %16, %5 : vector<16x128xf32>
    %24 = vector.shape_cast %23 : vector<16x128xf32> to vector<2x8x128xf32>
    %cst_5 = arith.constant dense<0.000000e+00> : vector<8x128xf32>
    %25 = vector.multi_reduction <add>, %24, %cst_5 [0] : vector<2x8x128xf32> to vector<8x128xf32>
    %26 = arith.addf %0, %25 : vector<8x128xf32>
    %27 = vector.shape_cast %16 : vector<16x128xf32> to vector<2x8x128xf32>
    %cst_6 = arith.constant dense<0.000000e+00> : vector<8x128xf32>
    %28 = vector.multi_reduction <add>, %27, %cst_6 [0] : vector<2x8x128xf32> to vector<8x128xf32>
    %29 = arith.addf %0, %28 : vector<8x128xf32>
    %30 = vector.shape_cast %5 : vector<16x128xf32> to vector<2x8x128xf32>
    %cst_7 = arith.constant dense<0.000000e+00> : vector<8x128xf32>
    %31 = vector.multi_reduction <add>, %30, %cst_7 [0] : vector<2x8x128xf32> to vector<8x128xf32>
    %32 = arith.addf %0, %31 : vector<8x128xf32>
    %33 = vector.shape_cast %22 : vector<16x128xf32> to vector<2x8x128xf32>
    %cst_8 = arith.constant dense<0.000000e+00> : vector<8x128xf32>
    %34 = vector.multi_reduction <add>, %33, %cst_8 [0] : vector<2x8x128xf32> to vector<8x128xf32>
    %35 = arith.addf %0, %34 : vector<8x128xf32>
    %c0_9 = arith.constant 0 : index
    %c0_10 = arith.constant 0 : index
    %c0_11 = arith.constant 0 : index
    %c0_12 = arith.constant 0 : index
    %36 = vector.load %arg3[%c0_9, %c0_10, %c0_11, %c0_12] : memref<1x4x8x128xf32, #tpu.memory_space<vmem>>, vector<1x1x8x128xf32>
    %37 = vector.shape_cast %36 : vector<1x1x8x128xf32> to vector<8x128xf32>
    %38 = vector.shape_cast %26 : vector<8x128xf32> to vector<1x1x8x128xf32>
    tpu.vector_store %arg3[%c0_9, %c0_10, %c0_11, %c0_12], %38 {strides = array<i32>} : memref<1x4x8x128xf32, #tpu.memory_space<vmem>>, vector<1x1x8x128xf32>,
    %c0_13 = arith.constant 0 : index
    %c1 = arith.constant 1 : index
    %c0_14 = arith.constant 0 : index
    %c0_15 = arith.constant 0 : index
    %39 = vector.load %arg3[%c0_13, %c1, %c0_14, %c0_15] : memref<1x4x8x128xf32, #tpu.memory_space<vmem>>, vector<1x1x8x128xf32>
    %40 = vector.shape_cast %39 : vector<1x1x8x128xf32> to vector<8x128xf32>
    %41 = vector.shape_cast %29 : vector<8x128xf32> to vector<1x1x8x128xf32>
    tpu.vector_store %arg3[%c0_13, %c1, %c0_14, %c0_15], %41 {strides = array<i32>} : memref<1x4x8x128xf32, #tpu.memory_space<vmem>>, vector<1x1x8x128xf32>,
    %c0_16 = arith.constant 0 : index
    %c2 = arith.constant 2 : index
    %c0_17 = arith.constant 0 : index
    %c0_18 = arith.constant 0 : index
    %42 = vector.load %arg3[%c0_16, %c2, %c0_17, %c0_18] : memref<1x4x8x128xf32, #tpu.memory_space<vmem>>, vector<1x1x8x128xf32>
    %43 = vector.shape_cast %42 : vector<1x1x8x128xf32> to vector<8x128xf32>
    %44 = vector.shape_cast %32 : vector<8x128xf32> to vector<1x1x8x128xf32>
    tpu.vector_store %arg3[%c0_16, %c2, %c0_17, %c0_18], %44 {strides = array<i32>} : memref<1x4x8x128xf32, #tpu.memory_space<vmem>>, vector<1x1x8x128xf32>,
    %c0_19 = arith.constant 0 : index
    %c3 = arith.constant 3 : index
    %c0_20 = arith.constant 0 : index
    %c0_21 = arith.constant 0 : index
    %45 = vector.load %arg3[%c0_19, %c3, %c0_20, %c0_21] : memref<1x4x8x128xf32, #tpu.memory_space<vmem>>, vector<1x1x8x128xf32>
    %46 = vector.shape_cast %45 : vector<1x1x8x128xf32> to vector<8x128xf32>
    %47 = vector.shape_cast %35 : vector<8x128xf32> to vector<1x1x8x128xf32>
    tpu.vector_store %arg3[%c0_19, %c3, %c0_20, %c0_21], %47 {strides = array<i32>} : memref<1x4x8x128xf32, #tpu.memory_space<vmem>>, vector<1x1x8x128xf32>,
    return
  }
  func.func @transform_0(%arg0: i32) -> (i32, i32) {
    %c0_i32 = arith.constant 0 : i32
    %c0_i32_0 = arith.constant 0 : i32
    return %arg0, %c0_i32 : i32, i32
  }
  func.func @transform_1(%arg0: i32) -> (i32, i32) {
    %c0_i32 = arith.constant 0 : i32
    %c0_i32_0 = arith.constant 0 : i32
    return %arg0, %c0_i32 : i32, i32
  }
  func.func @transform_2(%arg0: i32) -> (i32, i32, i32, i32) {
    %c0_i32 = arith.constant 0 : i32
    %c0_i32_0 = arith.constant 0 : i32
    %c0_i32_1 = arith.constant 0 : i32
    %c0_i32_2 = arith.constant 0 : i32
    return %arg0, %c0_i32, %c0_i32_0, %c0_i32_1 : i32, i32, i32, i32
  }
}

</mosaic_0001>

<llo_original>
// kernel: tpu_custom_call.1
$region0: #{tpu_custom_call.1}
  #allocation0 [shape = 'u32[]', space=smem, size = 0x4, offset = 0x4, fixed_abs, tag = 'smem constant byte address 0x4 - core index']
  #allocation1 [shape = 'u32[144,128]{1,0:T(1,128)}', space=vmem, size = 0x12000, scoped, tag = 'internal scratch']
  %s0 = inlined_call_operand.hbm [shape: f32[16,128], index: 0, kind: input, shape index: {}]
  %s1 = inlined_call_operand.hbm [shape: f32[16,128], index: 1, kind: input, shape index: {}]
  %s2 = inlined_call_operand.hbm [shape: f32[1,4,8,128], index: 2, kind: output, shape index: {}]
  %s3 = sld [smem:[#allocation0]]
  $region26: #{tpu_custom_call.1} parent=0
    _
  %s5 = ssub.s32 1, %s3
  %s6 = scalar_select 0, %s5, %s3
  $region1: #{tpu_custom_call.1} parent=0
    #allocation2 [shape = 'u8[8192]{0}', space=vmem, size = 0x2000, scoped, tag = 'input window, operand 0, single buffered']
    #allocation3 [shape = 's32[1]{0}', space=sflag, size = 0x4, scoped, tag = 'scoped memory for tpu_custom_call.1']
    #allocation4 [shape = 's32[1]{0}', space=sflag, size = 0x4, scoped, tag = 'scoped memory for tpu_custom_call.1']
    #allocation5 [shape = 'u8[8192]{0}', space=vmem, size = 0x2000, scoped, tag = 'input window, operand 1, single buffered']
    #allocation6 [shape = 's32[1]{0}', space=sflag, size = 0x4, scoped, tag = 'scoped memory for tpu_custom_call.1']
    #allocation7 [shape = 'u8[16384]{0}', space=vmem, size = 0x4000, scoped, tag = 'output window, operand 0, single buffered']
    %7 = vsyncpa [#allocation3], 0
    %8 = vsyncpa [#allocation6], 0
    %9 = vsyncpa [#allocation4], 0
    // Predicated region
    $region2: #{tpu_custom_call.1} parent=1 // pred_check
      _
    $region3: #{tpu_custom_call.1} parent=1 // pred_check_branch
      %11 = sbr.rel (0) target = $region5
    $region4: #{tpu_custom_call.1} parent=1 // pred_region
      %s13 = ssub.s32 256, 256
      %14 = vsyncadd [#allocation3], %s13
      %s15 = sshll.u32 [#allocation2], 4
      %s16 = int_to_ptr.vmem [resolvable:$true] %s15
      %21 = dma.hbm_to_vmem [thread:$0]  %s0, 256, %s16, [#allocation3], 128, 128, 8
    $region5: #{tpu_custom_call.1} parent=1 // pred_fallthru
      _
    // Predicated region
    $region6: #{tpu_custom_call.1} parent=1 // pred_check
      _
    $region7: #{tpu_custom_call.1} parent=1 // pred_check_branch
      %23 = sbr.rel (0) target = $region9
    $region8: #{tpu_custom_call.1} parent=1 // pred_region
      %s25 = ssub.s32 256, 256
      %26 = vsyncadd [#allocation6], %s25
      %s27 = sshll.u32 [#allocation5], 4
      %s28 = int_to_ptr.vmem [resolvable:$true] %s27
      %33 = dma.hbm_to_vmem [thread:$0]  %s1, 256, %s28, [#allocation6], 128, 128, 8
    $region9: #{tpu_custom_call.1} parent=1 // pred_fallthru
      _
    // Predicated region
    $region10: #{tpu_custom_call.1} parent=1 // pred_check
      _
    $region11: #{tpu_custom_call.1} parent=1 // pred_check_branch
      %35 = sbr.rel (0) target = $region13
    $region12: #{tpu_custom_call.1} parent=1 // pred_region
      %36 = dma.done [#allocation3], 256
    $region13: #{tpu_custom_call.1} parent=1 // pred_fallthru
      _
    // Predicated region
    $region14: #{tpu_custom_call.1} parent=1 // pred_check
      _
    $region15: #{tpu_custom_call.1} parent=1 // pred_check_branch
      %38 = sbr.rel (0) target = $region17
    $region16: #{tpu_custom_call.1} parent=1 // pred_region
      %39 = dma.done [#allocation6], 256
    $region17: #{tpu_custom_call.1} parent=1 // pred_fallthru
      _
    %v40 = vld [vmem:[#allocation2] sm:$0xff]
    %v41 = vld [vmem:[#allocation2 + $0x8] sm:$0xff]
    %v42 = vld [vmem:[#allocation5] sm:$0xff]
    %v43 = vld [vmem:[#allocation5 + $0x8] sm:$0xff]
    %v44 = vand.u32 2147483647, %v40
    %v45 = vand.u32 2147483647, %v41
    %v46 = vsub.f32 0.0, %v44
    %v47 = vsub.f32 0.0, %v45
    %v48 = vmul.f32 %v46, 1.442695
    %v49 = vpow.pop %v48
    %v50 = vmul.f32 %v47, 1.442695
    %v51 = vpow.pop %v50
    %v52 = vadd.f32 %v49, 1.0
    %v53 = vadd.f32 %v51, 1.0
    %v54 = vrcp.pop %v52
    %v55 = vrcp.pop %v53
    %vm56 = vcmp.ge.f32.partialorder %v40, 0.0
    %vm57 = vcmp.ge.f32.partialorder %v41, 0.0
    %v58 = vmul.f32 %v49, %v54
    %v59 = vmul.f32 %v51, %v55
    %v60 = vsel %vm56, %v54, %v58
    %v61 = vsel %vm57, %v55, %v59
    %v62 = vmax.f32 %v40, 0.0
    %v63 = vmax.f32 %v41, 0.0
    %v64 = vmul.f32 %v40, %v42
    %v65 = vmul.f32 %v41, %v43
    %v66 = vsub.f32 %v62, %v64
    %v67 = vsub.f32 %v63, %v65
    %v68 = vadd.f32 %v49, 1.0
    %v69 = vlog2.pop %v68
    %v70 = vmul.f32 %v69, 0.6931472
    %v71 = vmul.f32 -0.5, %v49
    %v72 = vadd.f32 %v71, 1.0
    %v73 = vmul.f32 %v72, %v49
    %v74 = vand.u32 2147483647, %v49
    %vm75 = vcmp.lt.f32.partialorder %v74, 0.0004427343
    %v76 = vsel %vm75, %v73, %v70
    %v77 = vadd.f32 %v51, 1.0
    %v78 = vlog2.pop %v77
    %v79 = vmul.f32 %v78, 0.6931472
    %v80 = vmul.f32 -0.5, %v51
    %v81 = vadd.f32 %v80, 1.0
    %v82 = vmul.f32 %v81, %v51
    %v83 = vand.u32 2147483647, %v51
    %vm84 = vcmp.lt.f32.partialorder %v83, 0.0004427343
    %v85 = vsel %vm84, %v82, %v79
    %v86 = vadd.f32 %v66, %v76
    %v87 = vadd.f32 %v67, %v85
    %v88 = vmul.f32 %v60, %v42
    %v89 = vmul.f32 %v61, %v43
    %v90 = vadd.f32 %v88, %v89
    %v91 = vadd.f32 %v90, 0.0
    %v92 = vadd.f32 %v60, %v61
    %v93 = vadd.f32 %v92, 0.0
    %v94 = vadd.f32 %v42, %v43
    %v95 = vadd.f32 %v94, 0.0
    %v96 = vadd.f32 %v86, %v87
    %v97 = vadd.f32 %v96, 0.0
    %98 = vst [vmem:[#allocation7] sm:$0xff] %v91
    %s99 = scalar_lea.vmem [#allocation7], 8
    %100 = vst [vmem:[%s99] sm:$0xff] %v93
    %s101 = scalar_lea.vmem [#allocation7], 16
    %102 = vst [vmem:[%s101] sm:$0xff] %v95
    %s103 = scalar_lea.vmem [#allocation7], 24
    %104 = vst [vmem:[%s103] sm:$0xff] %v97
    // Predicated region
    $region18: #{tpu_custom_call.1} parent=1 // pred_check
      _
    $region19: #{tpu_custom_call.1} parent=1 // pred_check_branch
      %106 = sbr.rel (0) target = $region21
    $region20: #{tpu_custom_call.1} parent=1 // pred_region
      %s108 = ssub.s32 512, 512
      %109 = vsyncadd [#allocation4], %s108
      %s110 = sshll.u32 [#allocation7], 4
      %s111 = int_to_ptr.vmem [resolvable:$true] %s110
      %116 = dma.vmem_to_hbm [thread:$0]  %s111, 512, %s2, [#allocation4], 128, 128, 8
    $region21: #{tpu_custom_call.1} parent=1 // pred_fallthru
      _
    // Predicated region
    $region22: #{tpu_custom_call.1} parent=1 // pred_check
      _
    $region23: #{tpu_custom_call.1} parent=1 // pred_check_branch
      %118 = sbr.rel (0) target = $region25
    $region24: #{tpu_custom_call.1} parent=1 // pred_region
      %119 = dma.done [#allocation4], 512
    $region25: #{tpu_custom_call.1} parent=1 // pred_fallthru
      _
    %120 = vsyncpa [#allocation3], 1
    %121 = vsyncpa [#allocation6], 1
    %122 = vsyncpa [#allocation4], 1

</llo_original>
